<compile_context>
chip_gen: v5e
topology: v5e:2x2
jax: 0.10.0
libtpu: 0.0.40
codegen_flags: <defaults>
</compile_context>

<pallas_src>
import jax
import jax.numpy as jnp
from jax.experimental import pallas as pl
from jax.experimental.pallas import tpu as pltpu

GAUSS_1D = (0.05, 0.25, 0.4, 0.25, 0.05)
EPS = 1e-6  # CharbonnierLoss eps


def _round_up(n, m):
    return ((n + m - 1) // m) * m


def _band_matrix(n_valid, n_pad):
    """Banded Gaussian matrix M of shape (n_pad, n_pad).

    M[i, r] = sum_t g[t] * [clamp(i + t - 2, 0, n_valid - 1) == r] for output
    rows i < n_valid; rows i >= n_valid (padding) are all zero.  Left-multiplying
    an image by M applies the 5-tap Gaussian with replicate ("edge") padding
    along that axis, restricted to the valid region.
    """
    i = jnp.arange(n_pad)[:, None]
    r = jnp.arange(n_pad)[None, :]
    m = jnp.zeros((n_pad, n_pad), jnp.float32)
    for t, g in enumerate(GAUSS_1D):
        src = jnp.clip(i + (t - 2), 0, n_valid - 1)
        m = m + g * (((src == r) & (i < n_valid)).astype(jnp.float32))
    return m


def _edge_loss_kernel(kh_ref, cw_ref, mask4_ref, valid_ref, x_ref, y_ref, out_ref):
    """One batch image per grid step; heavy lifting runs on the MXU."""
    # lap(x) - lap(y) == lap(x - y): compute the difference once.
    d = x_ref[0].astype(jnp.float32) - y_ref[0].astype(jnp.float32)  # (Hp, Wp)
    kh = kh_ref[...]
    cw = cw_ref[...]

    def conv_gauss(img):
        # separable 5x5 Gaussian with replicate padding == Kh @ img @ Cw
        t = jnp.dot(img, cw, preferred_element_type=jnp.float32)
        return jnp.dot(kh, t, preferred_element_type=jnp.float32)

    g1 = conv_gauss(d)
    # down = g1[::2, ::2]; new_filter[::2, ::2] = down * 4  ==  g1 * mask4
    g2 = conv_gauss(g1 * mask4_ref[...])
    lap = d - g2
    charb = jnp.sqrt(lap * lap + EPS) * valid_ref[...]
    # lane-dense per-batch partial sum (scalar broadcast across one vreg)
    out_ref[...] = jnp.broadcast_to(jnp.sum(charb), (1, 8, 128))


@jax.jit
def edge_loss(x, y):
    """x, y: NCHW tensors of shape (B, 1, H, W). Returns the scalar EdgeLoss."""
    B, C, H, W = x.shape
    assert C == 1, "EdgeLoss's (1,1,5,5) Gaussian kernel implies a single channel"

    Hp = _round_up(H, 8)
    Wp = _round_up(W, 128)

    # Squeeze the channel dim and zero-pad spatially to (Hp, Wp).  Keep the
    # incoming dtype so bf16 activations only pay bf16 HBM traffic.
    def prep(a):
        a = a[:, 0]
        return jnp.pad(a, ((0, 0), (0, Hp - H), (0, Wp - W)))

    xs, ys = prep(x), prep(y)

    kh = _band_matrix(H, Hp)        # row (sublane) pass, applied on the left
    cw = _band_matrix(W, Wp).T      # column (lane) pass, applied on the right

    ih = jnp.arange(Hp)[:, None]
    iw = jnp.arange(Wp)[None, :]
    in_valid = (ih < H) & (iw < W)
    mask4 = jnp.where(in_valid & (ih % 2 == 0) & (iw % 2 == 0), 4.0, 0.0)
    mask4 = mask4.astype(jnp.float32)
    valid = in_valid.astype(jnp.float32)

    partials = pl.pallas_call(
        _edge_loss_kernel,
        out_shape=jax.ShapeDtypeStruct((B, 8, 128), jnp.float32),
        grid=(B,),
        in_specs=[
            pl.BlockSpec((Hp, Hp), lambda b: (0, 0)),        # Kh
            pl.BlockSpec((Wp, Wp), lambda b: (0, 0)),        # Cw
            pl.BlockSpec((Hp, Wp), lambda b: (0, 0)),        # mask4
            pl.BlockSpec((Hp, Wp), lambda b: (0, 0)),        # valid mask
            pl.BlockSpec((1, Hp, Wp), lambda b: (b, 0, 0)),  # x (one image/step)
            pl.BlockSpec((1, Hp, Wp), lambda b: (b, 0, 0)),  # y
        ],
        out_specs=pl.BlockSpec((1, 8, 128), lambda b: (b, 0, 0)),
        compiler_params=pltpu.CompilerParams(
            dimension_semantics=("parallel",),
        ),
    )(kh, cw, mask4, valid, xs, ys)

    # CharbonnierLoss(mode=None) -> plain mean over the (B, 1, H, W) Laplacian diff.
    return jnp.sum(partials[:, 0, 0]) * (1.0 / (B * H * W))


# ----------------------- pure-JAX reference (for sanity) -----------------------
def _conv_gauss_ref(img):
    p = jnp.pad(img, ((0, 0), (2, 2), (2, 2)), mode="edge")
    H, W = img.shape[1], img.shape[2]
    acc = jnp.zeros_like(img)
    for di in range(5):
        for dj in range(5):
            acc = acc + (GAUSS_1D[di] * GAUSS_1D[dj]) * p[:, di:di + H, dj:dj + W]
    return acc


def _laplacian_ref(img):
    filtered = _conv_gauss_ref(img)
    H, W = img.shape[1], img.shape[2]
    ih = jnp.arange(H)[:, None]
    iw = jnp.arange(W)[None, :]
    mask = ((ih % 2) == 0) & ((iw % 2) == 0)
    new_filter = jnp.where(mask[None], filtered * 4.0, 0.0)
    return img - _conv_gauss_ref(new_filter)


def _edge_loss_ref(x, y):
    lx = _laplacian_ref(x[:, 0].astype(jnp.float32))
    ly = _laplacian_ref(y[:, 0].astype(jnp.float32))
    d = lx - ly
    return jnp.mean(jnp.sqrt(d * d + EPS))


if __name__ == "__main__":
    key = jax.random.PRNGKey(0)
    kx, ky = jax.random.split(key)
    # NCHW, C must be 1 for this module
    x = jax.random.normal(kx, (2, 1, 16, 16), dtype=jnp.float32)
    y = jax.random.normal(ky, (2, 1, 16, 16), dtype=jnp.float32)

    loss = edge_loss(x, y)
    jax.block_until_ready(loss)

    ref = _edge_loss_ref(x, y)
    # Typically agrees to ~1e-6; loose bound guards against MXU matmul rounding.
    assert jnp.allclose(loss, ref, atol=1e-3, rtol=1e-3), (loss, ref)

    print("KERNEL_OK")
</pallas_src>

<mosaic_0001>
module attributes {stable_mosaic.version = 11 : i64} {
  func.func @_edge_loss_kernel(%arg0: i32, %arg1: memref<16x16xf32, #tpu.memory_space<vmem>>, %arg2: memref<128x128xf32, #tpu.memory_space<vmem>>, %arg3: memref<16x128xf32, #tpu.memory_space<vmem>>, %arg4: memref<16x128xf32, #tpu.memory_space<vmem>>, %arg5: memref<1x16x128xf32, #tpu.memory_space<vmem>>, %arg6: memref<1x16x128xf32, #tpu.memory_space<vmem>>, %arg7: memref<1x8x128xf32, #tpu.memory_space<vmem>>) attributes {dimension_semantics = [#tpu.dimension_semantics<parallel>], iteration_bounds = array<i64: 2>, scalar_prefetch = 0 : i64, scratch_operands = 0 : i64, tpu.core_type = #tpu.core_type<tc>, window_params = [{pipeline_mode = #tpu.pipeline_mode<synchronous>, transform_indices = @transform_0, window_bounds = array<i64: 16, 16>}, {pipeline_mode = #tpu.pipeline_mode<synchronous>, transform_indices = @transform_1, window_bounds = array<i64: 128, 128>}, {pipeline_mode = #tpu.pipeline_mode<synchronous>, transform_indices = @transform_2, window_bounds = array<i64: 16, 128>}, {pipeline_mode = #tpu.pipeline_mode<synchronous>, transform_indices = @transform_3, window_bounds = array<i64: 16, 128>}, {transform_indices = @transform_4, window_bounds = array<i64: 1, 16, 128>}, {transform_indices = @transform_5, window_bounds = array<i64: 1, 16, 128>}, {transform_indices = @transform_6, window_bounds = array<i64: 1, 8, 128>}]} {
    %c0 = arith.constant 0 : index
    %c0_0 = arith.constant 0 : index
    %c0_1 = arith.constant 0 : index
    %0 = vector.load %arg5[%c0, %c0_0, %c0_1] : memref<1x16x128xf32, #tpu.memory_space<vmem>>, vector<1x16x128xf32>
    %1 = vector.shape_cast %0 : vector<1x16x128xf32> to vector<16x128xf32>
    %c0_2 = arith.constant 0 : index
    %c0_3 = arith.constant 0 : index
    %c0_4 = arith.constant 0 : index
    %2 = vector.load %arg6[%c0_2, %c0_3, %c0_4] : memref<1x16x128xf32, #tpu.memory_space<vmem>>, vector<1x16x128xf32>
    %3 = vector.shape_cast %2 : vector<1x16x128xf32> to vector<16x128xf32>
    %4 = arith.subf %1, %3 : vector<16x128xf32>
    %c0_5 = arith.constant 0 : index
    %c0_6 = arith.constant 0 : index
    %5 = vector.load %arg1[%c0_5, %c0_6] : memref<16x16xf32, #tpu.memory_space<vmem>>, vector<16x16xf32>
    %c0_7 = arith.constant 0 : index
    %c0_8 = arith.constant 0 : index
    %6 = vector.load %arg2[%c0_7, %c0_8] : memref<128x128xf32, #tpu.memory_space<vmem>>, vector<128x128xf32>
    %cst = arith.constant dense<0.000000e+00> : vector<16x128xf32>
    %7 = tpu.matmul %4, %6, %cst {dimension_numbers = #tpu.dot_dimension_numbers<[1], [0], [0], [1], [0, 0, 1, 1], [], []>} : vector<16x128xf32>, vector<128x128xf32>, vector<16x128xf32> -> vector<16x128xf32>
    %cst_9 = arith.constant dense<0.000000e+00> : vector<16x128xf32>
    %8 = tpu.matmul %5, %7, %cst_9 {dimension_numbers = #tpu.dot_dimension_numbers<[1], [0], [0], [1], [0, 0, 1, 1], [], []>} : vector<16x16xf32>, vector<16x128xf32>, vector<16x128xf32> -> vector<16x128xf32>
    %c0_10 = arith.constant 0 : index
    %c0_11 = arith.constant 0 : index
    %9 = vector.load %arg3[%c0_10, %c0_11] : memref<16x128xf32, #tpu.memory_space<vmem>>, vector<16x128xf32>
    %10 = arith.mulf %8, %9 : vector<16x128xf32>
    %cst_12 = arith.constant dense<0.000000e+00> : vector<16x128xf32>
    %11 = tpu.matmul %10, %6, %cst_12 {dimension_numbers = #tpu.dot_dimension_numbers<[1], [0], [0], [1], [0, 0, 1, 1], [], []>} : vector<16x128xf32>, vector<128x128xf32>, vector<16x128xf32> -> vector<16x128xf32>
    %cst_13 = arith.constant dense<0.000000e+00> : vector<16x128xf32>
    %12 = tpu.matmul %5, %11, %cst_13 {dimension_numbers = #tpu.dot_dimension_numbers<[1], [0], [0], [1], [0, 0, 1, 1], [], []>} : vector<16x16xf32>, vector<16x128xf32>, vector<16x128xf32> -> vector<16x128xf32>
    %13 = arith.subf %4, %12 : vector<16x128xf32>
    %14 = arith.mulf %13, %13 : vector<16x128xf32>
    %cst_14 = arith.constant 9.99999997E-7 : f32
    %15 = vector.broadcast %cst_14 : f32 to vector<16x128xf32>
    %16 = arith.addf %14, %15 : vector<16x128xf32>
    %17 = math.sqrt %16 : vector<16x128xf32>
    %c0_15 = arith.constant 0 : index
    %c0_16 = arith.constant 0 : index
    %18 = vector.load %arg4[%c0_15, %c0_16] : memref<16x128xf32, #tpu.memory_space<vmem>>, vector<16x128xf32>
    %19 = arith.mulf %17, %18 : vector<16x128xf32>
    %20 = vector.shape_cast %19 : vector<16x128xf32> to vector<1x16x128xf32>
    %cst_17 = arith.constant dense<0.000000e+00> : vector<1xf32>
    %21 = vector.multi_reduction <add>, %20, %cst_17 [1, 2] : vector<1x16x128xf32> to vector<1xf32>
    %22 = vector.shape_cast %21 : vector<1xf32> to vector<1x1x1xf32>
    %23 = vector.extract %22[0, 0, 0] : f32 from vector<1x1x1xf32>
    %24 = vector.broadcast %23 : f32 to vector<1x8x128xf32>
    %c0_18 = arith.constant 0 : index
    %c0_19 = arith.constant 0 : index
    %c0_20 = arith.constant 0 : index
    %25 = vector.load %arg7[%c0_18, %c0_19, %c0_20] : memref<1x8x128xf32, #tpu.memory_space<vmem>>, vector<1x8x128xf32>
    tpu.vector_store %arg7[%c0_18, %c0_19, %c0_20], %24 {strides = array<i32>} : memref<1x8x128xf32, #tpu.memory_space<vmem>>, vector<1x8x128xf32>,
    return
  }
  func.func @transform_0(%arg0: i32) -> (i32, i32) {
    %c0_i32 = arith.constant 0 : i32
    %c0_i32_0 = arith.constant 0 : i32
    %c0_i32_1 = arith.constant 0 : i32
    return %c0_i32, %c0_i32_0 : i32, i32
  }
  func.func @transform_1(%arg0: i32) -> (i32, i32) {
    %c0_i32 = arith.constant 0 : i32
    %c0_i32_0 = arith.constant 0 : i32
    %c0_i32_1 = arith.constant 0 : i32
    return %c0_i32, %c0_i32_0 : i32, i32
  }
  func.func @transform_2(%arg0: i32) -> (i32, i32) {
    %c0_i32 = arith.constant 0 : i32
    %c0_i32_0 = arith.constant 0 : i32
    %c0_i32_1 = arith.constant 0 : i32
    return %c0_i32, %c0_i32_0 : i32, i32
  }
  func.func @transform_3(%arg0: i32) -> (i32, i32) {
    %c0_i32 = arith.constant 0 : i32
    %c0_i32_0 = arith.constant 0 : i32
    %c0_i32_1 = arith.constant 0 : i32
    return %c0_i32, %c0_i32_0 : i32, i32
  }
  func.func @transform_4(%arg0: i32) -> (i32, i32, i32) {
    %c0_i32 = arith.constant 0 : i32
    %c0_i32_0 = arith.constant 0 : i32
    %c0_i32_1 = arith.constant 0 : i32
    return %arg0, %c0_i32, %c0_i32_0 : i32, i32, i32
  }
  func.func @transform_5(%arg0: i32) -> (i32, i32, i32) {
    %c0_i32 = arith.constant 0 : i32
    %c0_i32_0 = arith.constant 0 : i32
    %c0_i32_1 = arith.constant 0 : i32
    return %arg0, %c0_i32, %c0_i32_0 : i32, i32, i32
  }
  func.func @transform_6(%arg0: i32) -> (i32, i32, i32) {
    %c0_i32 = arith.constant 0 : i32
    %c0_i32_0 = arith.constant 0 : i32
    %c0_i32_1 = arith.constant 0 : i32
    return %arg0, %c0_i32, %c0_i32_0 : i32, i32, i32
  }
}

</mosaic_0001>

<llo_original>
// kernel: edge_loss.1
$region0: #{edge_loss.1}
  #allocation0 [shape = 'u32[]', space=smem, size = 0x4, offset = 0x4, fixed_abs, tag = 'smem constant byte address 0x4 - core index']
  #allocation1 [shape = 'u32[72,128]{1,0:T(1,128)}', space=vmem, size = 0x9000, scoped, tag = 'internal scratch']
  %s0 = inlined_call_operand.vmem [shape: f32[16,16], index: 0, kind: input, shape index: {}]
  %s1 = inlined_call_operand.vmem [shape: f32[128,128], index: 1, kind: input, shape index: {}]
  %s2 = inlined_call_operand.vmem [shape: f32[16,128], index: 2, kind: input, shape index: {}]
  %s3 = inlined_call_operand.vmem [shape: f32[16,128], index: 3, kind: input, shape index: {}]
  %s4 = inlined_call_operand.vmem [shape: f32[2,16,128], index: 4, kind: input, shape index: {}]
  %s5 = inlined_call_operand.vmem [shape: f32[2,16,128], index: 5, kind: input, shape index: {}]
  %s6 = inlined_call_operand.vmem [shape: f32[2,8,128], index: 6, kind: output, shape index: {}]
  %s7 = sld [smem:[#allocation0]]
  $region57: #{edge_loss.1} parent=0
    _
  %s9 = ssub.s32 1, %s7
  %s10 = scalar_select 0, %s9, %s7
  loop: start=0, step=1, limit=4
  $region2: #{edge_loss.1} parent=0 // loop_pre_header
    _
  $region3: #{edge_loss.1} parent=0 // loop_header
    %s12 = sphi 0, %s16
    %p13 = scmp.ge.s32.totalorder %s12, 4
    %s20 = sphi 0, %s20
    %s22 = sphi 0, %s20
    %s23 = sphi 0, %s22
    %s37 = sphi 0, %s23
    %s41 = sphi 0, %s41
    %s43 = sphi 0, %s41
    %s44 = sphi 0, %s43
    %s58 = sphi 0, %s44
    %s62 = sphi 0, %s62
    %s64 = sphi 0, %s62
    %s65 = sphi 0, %s64
    %s79 = sphi 0, %s65
    %s83 = sphi 0, %s83
    %s85 = sphi 0, %s83
    %s86 = sphi 0, %s85
    %s100 = sphi 0, %s86
    %s106 = sphi 0, %s108
    %s109 = sphi 0, %s106
    %s110 = sphi 0, %s109
    %s126 = sphi 0, %s110
    %s132 = sphi 0, %s134
    %s135 = sphi 0, %s132
    %s136 = sphi 0, %s135
    %s152 = sphi 0, %s136
    %s158 = sphi 0, %s160
    %s161 = sphi 0, %s158
    %s162 = sphi 0, %s161
    %s178 = sphi 0, %s162
  $region4: #{edge_loss.1} parent=0 // loop_header_branch
    %15 = sbr.rel (%p13) target = $region8
  $region5: #{edge_loss.1} parent=0 // loop_body
    %s17 = ssub.s32 %s12, 1
    %s18 = ssub.s32 %s12, 2
    %s19 = sadd.s32 %s12, 1
    %s21 = sadd.s32 %s20, 1
    %p24 = scmp.eq.s32.totalorder %s12, 1
    %p25 = scmp.ne.s32.totalorder %s20, %s22
    %p26 = scmp.eq.s32.totalorder %s12, 0
    %p27 = por %p25, %p26
    %p28 = scmp.ne.s32.totalorder %s20, %s22
    %p29 = scmp.eq.s32.totalorder %s17, 1
    %p30 = por %p28, %p29
    %p31 = scmp.ne.s32.totalorder %s22, %s23
    %p32 = scmp.eq.s32.totalorder %s17, 0
    %p33 = por %p31, %p32
    %p34 = scmp.ne.s32.totalorder %s22, %s23
    %p35 = scmp.eq.s32.totalorder %s18, 1
    %p36 = por %p34, %p35
    %p38 = scmp.ne.s32.totalorder %s23, %s37
    %p39 = scmp.eq.s32.totalorder %s18, 0
    %p40 = por %p38, %p39
    %s42 = sadd.s32 %s41, 1
    %p45 = scmp.eq.s32.totalorder %s12, 1
    %p46 = scmp.ne.s32.totalorder %s41, %s43
    %p47 = scmp.eq.s32.totalorder %s12, 0
    %p48 = por %p46, %p47
    %p49 = scmp.ne.s32.totalorder %s41, %s43
    %p50 = scmp.eq.s32.totalorder %s17, 1
    %p51 = por %p49, %p50
    %p52 = scmp.ne.s32.totalorder %s43, %s44
    %p53 = scmp.eq.s32.totalorder %s17, 0
    %p54 = por %p52, %p53
    %p55 = scmp.ne.s32.totalorder %s43, %s44
    %p56 = scmp.eq.s32.totalorder %s18, 1
    %p57 = por %p55, %p56
    %p59 = scmp.ne.s32.totalorder %s44, %s58
    %p60 = scmp.eq.s32.totalorder %s18, 0
    %p61 = por %p59, %p60
    %s63 = sadd.s32 %s62, 1
    %p66 = scmp.eq.s32.totalorder %s12, 1
    %p67 = scmp.ne.s32.totalorder %s62, %s64
    %p68 = scmp.eq.s32.totalorder %s12, 0
    %p69 = por %p67, %p68
    %p70 = scmp.ne.s32.totalorder %s62, %s64
    %p71 = scmp.eq.s32.totalorder %s17, 1
    %p72 = por %p70, %p71
    %p73 = scmp.ne.s32.totalorder %s64, %s65
    %p74 = scmp.eq.s32.totalorder %s17, 0
    %p75 = por %p73, %p74
    %p76 = scmp.ne.s32.totalorder %s64, %s65
    %p77 = scmp.eq.s32.totalorder %s18, 1
    %p78 = por %p76, %p77
    %p80 = scmp.ne.s32.totalorder %s65, %s79
    %p81 = scmp.eq.s32.totalorder %s18, 0
    %p82 = por %p80, %p81
    %s84 = sadd.s32 %s83, 1
    %p87 = scmp.eq.s32.totalorder %s12, 1
    %p88 = scmp.ne.s32.totalorder %s83, %s85
    %p89 = scmp.eq.s32.totalorder %s12, 0
    %p90 = por %p88, %p89
    %p91 = scmp.ne.s32.totalorder %s83, %s85
    %p92 = scmp.eq.s32.totalorder %s17, 1
    %p93 = por %p91, %p92
    %p94 = scmp.ne.s32.totalorder %s85, %s86
    %p95 = scmp.eq.s32.totalorder %s17, 0
    %p96 = por %p94, %p95
    %p97 = scmp.ne.s32.totalorder %s85, %s86
    %p98 = scmp.eq.s32.totalorder %s18, 1
    %p99 = por %p97, %p98
    %p101 = scmp.ne.s32.totalorder %s86, %s100
    %p102 = scmp.eq.s32.totalorder %s18, 0
    %p103 = por %p101, %p102
    %s104 = ssub.s32 %s12, %s19
    %p105 = scmp.eq.s32.totalorder %s104, 0
    %s107 = sadd.s32 %s106, 1
    %s108 = scalar_select %p105, %s106, %s107
    %p111 = pneg %p105
    %p112 = scmp.eq.s32.totalorder %s12, 1
    %p113 = por %p111, %p112
    %p114 = scmp.ne.s32.totalorder %s106, %s109
    %p115 = scmp.eq.s32.totalorder %s12, 0
    %p116 = por %p114, %p115
    %p117 = scmp.ne.s32.totalorder %s106, %s109
    %p118 = scmp.eq.s32.totalorder %s17, 1
    %p119 = por %p117, %p118
    %p120 = scmp.ne.s32.totalorder %s109, %s110
    %p121 = scmp.eq.s32.totalorder %s17, 0
    %p122 = por %p120, %p121
    %p123 = scmp.ne.s32.totalorder %s109, %s110
    %p124 = scmp.eq.s32.totalorder %s18, 1
    %p125 = por %p123, %p124
    %p127 = scmp.ne.s32.totalorder %s110, %s126
    %p128 = scmp.eq.s32.totalorder %s18, 0
    %p129 = por %p127, %p128
    %s130 = ssub.s32 %s12, %s19
    %p131 = scmp.eq.s32.totalorder %s130, 0
    %s133 = sadd.s32 %s132, 1
    %s134 = scalar_select %p131, %s132, %s133
    %p137 = pneg %p131
    %p138 = scmp.eq.s32.totalorder %s12, 1
    %p139 = por %p137, %p138
    %p140 = scmp.ne.s32.totalorder %s132, %s135
    %p141 = scmp.eq.s32.totalorder %s12, 0
    %p142 = por %p140, %p141
    %p143 = scmp.ne.s32.totalorder %s132, %s135
    %p144 = scmp.eq.s32.totalorder %s17, 1
    %p145 = por %p143, %p144
    %p146 = scmp.ne.s32.totalorder %s135, %s136
    %p147 = scmp.eq.s32.totalorder %s17, 0
    %p148 = por %p146, %p147
    %p149 = scmp.ne.s32.totalorder %s135, %s136
    %p150 = scmp.eq.s32.totalorder %s18, 1
    %p151 = por %p149, %p150
    %p153 = scmp.ne.s32.totalorder %s136, %s152
    %p154 = scmp.eq.s32.totalorder %s18, 0
    %p155 = por %p153, %p154
    %s156 = ssub.s32 %s12, %s19
    %p157 = scmp.eq.s32.totalorder %s156, 0
    %s159 = sadd.s32 %s158, 1
    %s160 = scalar_select %p157, %s158, %s159
    %p163 = pneg %p157
    %p164 = scmp.eq.s32.totalorder %s12, 1
    %p165 = por %p163, %p164
    %p166 = scmp.ne.s32.totalorder %s158, %s161
    %p167 = scmp.eq.s32.totalorder %s12, 0
    %p168 = por %p166, %p167
    %p169 = scmp.ne.s32.totalorder %s158, %s161
    %p170 = scmp.eq.s32.totalorder %s17, 1
    %p171 = por %p169, %p170
    %p172 = scmp.ne.s32.totalorder %s161, %s162
    %p173 = scmp.eq.s32.totalorder %s17, 0
    %p174 = por %p172, %p173
    %p175 = scmp.ne.s32.totalorder %s161, %s162
    %p176 = scmp.eq.s32.totalorder %s18, 1
    %p177 = por %p175, %p176
    %p179 = scmp.ne.s32.totalorder %s162, %s178
    %p180 = scmp.eq.s32.totalorder %s18, 0
    %p181 = por %p179, %p180
    %p182 = scmp.le.s32.totalorder 1, %s12
    %p183 = scmp.lt.s32.totalorder %s12, 3
    %p184 = pnand %p182, %p183
    %p185 = pneg %p184
    // Predicated region
    $region9: #{edge_loss.1} parent=5 // pred_check
      _
    $region10: #{edge_loss.1} parent=5 // pred_check_branch
      %187 = sbr.rel (%p184) target = $region12
    $region11: #{edge_loss.1} parent=5 // pred_region
      %s188 = ssub.s32 %s12, 1
      // Predicated region
      $region13: #{edge_loss.1} parent=11 // pred_check
        %p189 = pneg %p33
      $region14: #{edge_loss.1} parent=11 // pred_check_branch
        %191 = sbr.rel (%p189) target = $region16
      $region15: #{edge_loss.1} parent=11 // pred_region
        _
      $region16: #{edge_loss.1} parent=11 // pred_fallthru
        _
      // Predicated region
      $region17: #{edge_loss.1} parent=11 // pred_check
        %p192 = pneg %p54
      $region18: #{edge_loss.1} parent=11 // pred_check_branch
        %194 = sbr.rel (%p192) target = $region20
      $region19: #{edge_loss.1} parent=11 // pred_region
        _
      $region20: #{edge_loss.1} parent=11 // pred_fallthru
        _
      // Predicated region
      $region21: #{edge_loss.1} parent=11 // pred_check
        %p195 = pneg %p75
      $region22: #{edge_loss.1} parent=11 // pred_check_branch
        %197 = sbr.rel (%p195) target = $region24
      $region23: #{edge_loss.1} parent=11 // pred_region
        _
      $region24: #{edge_loss.1} parent=11 // pred_fallthru
        _
      // Predicated region
      $region25: #{edge_loss.1} parent=11 // pred_check
        %p198 = pneg %p96
      $region26: #{edge_loss.1} parent=11 // pred_check_branch
        %200 = sbr.rel (%p198) target = $region28
      $region27: #{edge_loss.1} parent=11 // pred_region
        _
      $region28: #{edge_loss.1} parent=11 // pred_fallthru
        _
    $region12: #{edge_loss.1} parent=5 // pred_fallthru
      _
    %p201 = scmp.lt.s32.totalorder %s12, 2
    // Predicated region
    $region29: #{edge_loss.1} parent=5 // pred_check
      %p202 = pneg %p201
    $region30: #{edge_loss.1} parent=5 // pred_check_branch
      %204 = sbr.rel (%p202) target = $region32
    $region31: #{edge_loss.1} parent=5 // pred_region
      // Predicated region
      $region33: #{edge_loss.1} parent=31 // pred_check
        %p205 = pneg %p116
      $region34: #{edge_loss.1} parent=31 // pred_check_branch
        %207 = sbr.rel (%p205) target = $region36
      $region35: #{edge_loss.1} parent=31 // pred_region
        %p208 = scmp.lt.s32.totalorder %s12, 1
        %s209 = scalar_select %p208, %s12, 1
        %s210 = smul.addr %s209, 2
        %s211 = smul.addr %s210, 8
        %s212 = scalar_lea.vmem %s4, %s211
      $region36: #{edge_loss.1} parent=31 // pred_fallthru
        _
      // Predicated region
      $region37: #{edge_loss.1} parent=31 // pred_check
        %p213 = pneg %p142
      $region38: #{edge_loss.1} parent=31 // pred_check_branch
        %215 = sbr.rel (%p213) target = $region40
      $region39: #{edge_loss.1} parent=31 // pred_region
        %p216 = scmp.lt.s32.totalorder %s12, 1
        %s217 = scalar_select %p216, %s12, 1
        %s218 = smul.addr %s217, 2
        %s219 = smul.addr %s218, 8
        %s220 = scalar_lea.vmem %s5, %s219
      $region40: #{edge_loss.1} parent=31 // pred_fallthru
        _
    $region32: #{edge_loss.1} parent=5 // pred_fallthru
      _
    %p221 = scmp.le.s32.totalorder 1, %s12
    %p222 = scmp.lt.s32.totalorder %s12, 3
    %p223 = pnand %p221, %p222
    %p224 = pneg %p223
    // Predicated region
    $region41: #{edge_loss.1} parent=5 // pred_check
      _
    $region42: #{edge_loss.1} parent=5 // pred_check_branch
      %226 = sbr.rel (%p223) target = $region44
    $region43: #{edge_loss.1} parent=5 // pred_region
      %s227 = ssub.s32 %s12, 1
      %p228 = pneg %p33
      %p229 = pneg %p30
      %p230 = pneg %p54
      %p231 = pneg %p51
      %p232 = pneg %p75
      %p233 = pneg %p72
      %p234 = pneg %p96
      %p235 = pneg %p93
      %p236 = scmp.lt.s32.totalorder %s17, 1
      %s237 = scalar_select %p236, %s17, 1
      %s238 = smul.addr %s237, 2
      %s239 = smul.addr %s238, 8
      %s240 = scalar_lea.vmem %s4, %s239
      %p241 = pneg %p122
      %p242 = pneg %p119
      %p243 = scmp.lt.s32.totalorder %s17, 1
      %s244 = scalar_select %p243, %s17, 1
      %s245 = smul.addr %s244, 2
      %s246 = smul.addr %s245, 8
      %s247 = scalar_lea.vmem %s5, %s246
      %p248 = pneg %p148
      %p249 = pneg %p145
      %p250 = pneg %p174
      %p251 = pneg %p171
      %p252 = scmp.lt.s32.totalorder %s17, 1
      %s253 = scalar_select %p252, %s17, 1
      %s254 = smul.addr %s253, 8
      %s255 = scalar_lea.vmem %s6, %s254
      %p256 = scmp.lt.s32.totalorder %s17, 1
      %s257 = scalar_select %p256, %s17, 1
      %s258 = smul.addr %s257, 2
      %s259 = smul.addr %s258, 8
      %s260 = scalar_lea.vmem %s4, %s259
      %p261 = scmp.lt.s32.totalorder %s17, 1
      %s262 = scalar_select %p261, %s17, 1
      %s263 = smul.addr %s262, 2
      %s264 = smul.addr %s263, 8
      %s265 = scalar_lea.vmem %s5, %s264
      %p266 = scmp.lt.s32.totalorder %s17, 1
      %s267 = scalar_select %p266, %s17, 1
      %s268 = smul.addr %s267, 8
      %s269 = scalar_lea.vmem %s6, %s268
      %v270 = vld [vmem:[%s260] sm:$0xff]
      %v271 = vld [vmem:[%s260 + $0x8] sm:$0xff]
      %v272 = vld [vmem:[%s265] sm:$0xff]
      %v273 = vld [vmem:[%s265 + $0x8] sm:$0xff]
      %v274 = vsub.f32 %v270, %v272
      %v275 = vsub.f32 %v271, %v273
      %v276 = vld [vmem:[%s0] sm:$0xff]
      %v277 = vld [vmem:[%s0 + $0x8] sm:$0xff]
      %v278 = vld [vmem:[%s1] sm:$0xff]
      %v279 = vld [vmem:[%s1 + $0x8] sm:$0xff]
      %v280 = vld [vmem:[%s1 + $0x10] sm:$0xff]
      %v281 = vld [vmem:[%s1 + $0x18] sm:$0xff]
      %v282 = vld [vmem:[%s1 + $0x20] sm:$0xff]
      %v283 = vld [vmem:[%s1 + $0x28] sm:$0xff]
      %v284 = vld [vmem:[%s1 + $0x30] sm:$0xff]
      %v285 = vld [vmem:[%s1 + $0x38] sm:$0xff]
      %v286 = vld [vmem:[%s1 + $0x40] sm:$0xff]
      %v287 = vld [vmem:[%s1 + $0x48] sm:$0xff]
      %v288 = vld [vmem:[%s1 + $0x50] sm:$0xff]
      %v289 = vld [vmem:[%s1 + $0x58] sm:$0xff]
      %v290 = vld [vmem:[%s1 + $0x60] sm:$0xff]
      %v291 = vld [vmem:[%s1 + $0x68] sm:$0xff]
      %v292 = vld [vmem:[%s1 + $0x70] sm:$0xff]
      %v293 = vld [vmem:[%s1 + $0x78] sm:$0xff]
      %294 = vmatpush.msra.mxu0 %v293
      %295 = vmatpush.msra.mxu0 %v292
      %296 = vmatpush.msra.mxu0 %v291
      %297 = vmatpush.msra.mxu0 %v290
      %298 = vmatpush.msra.mxu0 %v289
      %299 = vmatpush.msra.mxu0 %v288
      %300 = vmatpush.msra.mxu0 %v287
      %301 = vmatpush.msra.mxu0 %v286
      %302 = vmatpush.msra.mxu0 %v285
      %303 = vmatpush.msra.mxu0 %v284
      %304 = vmatpush.msra.mxu0 %v283
      %305 = vmatpush.msra.mxu0 %v282
      %306 = vmatpush.msra.mxu0 %v281
      %307 = vmatpush.msra.mxu0 %v280
      %308 = vmatpush.msra.mxu0 %v279
      %309 = vmatpush.msra.mxu0 %v278
      %310 = vmatmul.f32.gmra.mxu0 %v274
      %v311 = vpop.f32.mrf.mxu0
      %v312 = vadd.f32 0.0, %v311
      %313 = vmatmul.f32.gmra.mxu0 %v275
      %v314 = vpop.f32.mrf.mxu0
      %v315 = vadd.f32 0.0, %v314
      %316 = vdwg.mxu0
      %vm317 = vcmask 130048
      %v319 = vsel %vm317, %v276, 0
      %v322 = vsel %vm317, %v277, 0
      %324 = vmatpush.msra.mxu0 0.0
      %325 = vmatpush.msra.mxu0 0.0
      %326 = vmatpush.msra.mxu0 0.0
      %327 = vmatpush.msra.mxu0 0.0
      %328 = vmatpush.msra.mxu0 0.0
      %329 = vmatpush.msra.mxu0 0.0
      %330 = vmatpush.msra.mxu0 0.0
      %331 = vmatpush.msra.mxu0 0.0
      %332 = vmatpush.msra.mxu0 0.0
      %333 = vmatpush.msra.mxu0 0.0
      %334 = vmatpush.msra.mxu0 0.0
      %335 = vmatpush.msra.mxu0 0.0
      %336 = vmatpush.msra.mxu0 0.0
      %337 = vmatpush.msra.mxu0 0.0
      %338 = vmatpush.msra.mxu0 %v315
      %339 = vmatpush.msra.mxu0 %v312
      %340 = vmatmul.f32.gmra.mxu0 %v319
      %v341 = vpop.f32.mrf.mxu0
      %v342 = vadd.f32 0.0, %v341
      %343 = vmatmul.f32.gmra.mxu0 %v322
      %v344 = vpop.f32.mrf.mxu0
      %v345 = vadd.f32 0.0, %v344
      %346 = vdwg.mxu0
      %v347 = vld [vmem:[%s2] sm:$0xff]
      %v348 = vld [vmem:[%s2 + $0x8] sm:$0xff]
      %v349 = vmul.f32 %v342, %v347
      %v350 = vmul.f32 %v345, %v348
      %351 = vmatpush.msra.mxu0 %v293
      %352 = vmatpush.msra.mxu0 %v292
      %353 = vmatpush.msra.mxu0 %v291
      %354 = vmatpush.msra.mxu0 %v290
      %355 = vmatpush.msra.mxu0 %v289
      %356 = vmatpush.msra.mxu0 %v288
      %357 = vmatpush.msra.mxu0 %v287
      %358 = vmatpush.msra.mxu0 %v286
      %359 = vmatpush.msra.mxu0 %v285
      %360 = vmatpush.msra.mxu0 %v284
      %361 = vmatpush.msra.mxu0 %v283
      %362 = vmatpush.msra.mxu0 %v282
      %363 = vmatpush.msra.mxu0 %v281
      %364 = vmatpush.msra.mxu0 %v280
      %365 = vmatpush.msra.mxu0 %v279
      %366 = vmatpush.msra.mxu0 %v278
      %367 = vmatmul.f32.gmra.mxu0 %v349
      %v368 = vpop.f32.mrf.mxu0
      %v369 = vadd.f32 0.0, %v368
      %370 = vmatmul.f32.gmra.mxu0 %v350
      %v371 = vpop.f32.mrf.mxu0
      %v372 = vadd.f32 0.0, %v371
      %373 = vdwg.mxu0
      %374 = vmatpush.msra.mxu0 0.0
      %375 = vmatpush.msra.mxu0 0.0
      %376 = vmatpush.msra.mxu0 0.0
      %377 = vmatpush.msra.mxu0 0.0
      %378 = vmatpush.msra.mxu0 0.0
      %379 = vmatpush.msra.mxu0 0.0
      %380 = vmatpush.msra.mxu0 0.0
      %381 = vmatpush.msra.mxu0 0.0
      %382 = vmatpush.msra.mxu0 0.0
      %383 = vmatpush.msra.mxu0 0.0
      %384 = vmatpush.msra.mxu0 0.0
      %385 = vmatpush.msra.mxu0 0.0
      %386 = vmatpush.msra.mxu0 0.0
      %387 = vmatpush.msra.mxu0 0.0
      %388 = vmatpush.msra.mxu0 %v372
      %389 = vmatpush.msra.mxu0 %v369
      %390 = vmatmul.f32.gmra.mxu0 %v319
      %v391 = vpop.f32.mrf.mxu0
      %v392 = vadd.f32 0.0, %v391
      %393 = vmatmul.f32.gmra.mxu0 %v322
      %v394 = vpop.f32.mrf.mxu0
      %v395 = vadd.f32 0.0, %v394
      %396 = vdwg.mxu0
      %v397 = vsub.f32 %v274, %v392
      %v398 = vsub.f32 %v275, %v395
      %v399 = vmul.f32 %v397, %v397
      %v400 = vmul.f32 %v398, %v398
      %v401 = vadd.f32 %v399, 1e-06
      %v402 = vadd.f32 %v400, 1e-06
      %v403 = vrsqrt.pop %v401
      %v404 = vmul.f32 %v403, %v401
      %v405 = vmul.f32 %v404, %v403
      %v406 = vmul.f32 0.5, %v405
      %v407 = vsub.f32 1.5, %v406
      %v408 = vmul.f32 %v403, %v407
      %v409 = vmul.f32 %v401, %v408
      %vm410 = vcmp.eq.f32.partialorder %v401, inf
      %v411 = vsel %vm410, %v401, %v409
      %vm412 = vcmp.eq.f32.partialorder %v401, 0.0
      %v413 = vand.u32 %v401, 2147483648
      %v414 = vsel %vm412, %v413, %v411
      %v415 = vrsqrt.pop %v402
      %v416 = vmul.f32 %v415, %v402
      %v417 = vmul.f32 %v416, %v415
      %v418 = vmul.f32 0.5, %v417
      %v419 = vsub.f32 1.5, %v418
      %v420 = vmul.f32 %v415, %v419
      %v421 = vmul.f32 %v402, %v420
      %vm422 = vcmp.eq.f32.partialorder %v402, inf
      %v423 = vsel %vm422, %v402, %v421
      %vm424 = vcmp.eq.f32.partialorder %v402, 0.0
      %v425 = vand.u32 %v402, 2147483648
      %v426 = vsel %vm424, %v425, %v423
      %v427 = vld [vmem:[%s3] sm:$0xff]
      %v428 = vld [vmem:[%s3 + $0x8] sm:$0xff]
      %v429 = vmul.f32 %v414, %v427
      %v430 = vmul.f32 %v426, %v428
      %v431 = vadd.f32 %v429, %v430
      %432 = vadd.xlane.f32.xlu0 %v431
      %v433 = vpop.xlane.xlu0 %432
      %v434 = vrot.slane %v433, 4
      %v435 = vadd.f32 %v433, %v434
      %v436 = vrot.slane %v435, 2
      %v437 = vadd.f32 %v435, %v436
      %v438 = vrot.slane %v437, 1
      %v439 = vadd.f32 %v437, %v438
      %s440 = vtos %v439
      %v441 = vstv %s440
      %442 = vst [vmem:[%s269] sm:$0xff] %v441
      %p443 = scmp.lt.s32.totalorder %s17, 1
      %s444 = scalar_select %p443, %s17, 1
      %s445 = smul.addr %s444, 8
      %s446 = scalar_lea.vmem %s6, %s445
      // Predicated region
      $region45: #{edge_loss.1} parent=43 // pred_check
        %p447 = pneg %p171
      $region46: #{edge_loss.1} parent=43 // pred_check_branch
        %449 = sbr.rel (%p447) target = $region48
      $region47: #{edge_loss.1} parent=43 // pred_region
        _
      $region48: #{edge_loss.1} parent=43 // pred_fallthru
        _
    $region44: #{edge_loss.1} parent=5 // pred_fallthru
      _
    %p450 = scmp.le.s32.totalorder 2, %s12
    // Predicated region
    $region49: #{edge_loss.1} parent=5 // pred_check
      %p451 = pneg %p450
    $region50: #{edge_loss.1} parent=5 // pred_check_branch
      %453 = sbr.rel (%p451) target = $region52
    $region51: #{edge_loss.1} parent=5 // pred_region
      %s454 = ssub.s32 %s12, 2
      // Predicated region
      $region53: #{edge_loss.1} parent=51 // pred_check
        %p455 = pneg %p177
      $region54: #{edge_loss.1} parent=51 // pred_check_branch
        %457 = sbr.rel (%p455) target = $region56
      $region55: #{edge_loss.1} parent=51 // pred_region
        %p458 = scmp.lt.s32.totalorder %s18, 1
        %s459 = scalar_select %p458, %s18, 1
        %s460 = smul.addr %s459, 8
        %s461 = scalar_lea.vmem %s6, %s460
      $region56: #{edge_loss.1} parent=51 // pred_fallthru
        _
    $region52: #{edge_loss.1} parent=5 // pred_fallthru
      _
  $region6: #{edge_loss.1} parent=0 // loop_footer
    %s16 = sadd.s32 1, %s12
  $region7: #{edge_loss.1} parent=0 // loop_footer_branch
    %11 = sbr.rel target = $region3
  $region8: #{edge_loss.1} parent=0 // loop_exit
    _

</llo_original>
